<compile_context>
chip_gen: v7x
topology: tpu7x:2x2x1
jax: 0.10.0
libtpu: 0.0.40
codegen_flags: <defaults>
</compile_context>

<pallas_src>
import jax
import jax.numpy as jnp
from jax.experimental import pallas as pl
from jax.experimental.pallas import tpu as pltpu


def _round_up(x, m):
    return ((x + m - 1) // m) * m


def _matmul_kernel_single_k(x_ref, w_ref, o_ref):
    # grid = (Mp//tm, Np//tn); whole K fits in one tile -> no accumulator
    # round-trip, write the MXU result directly.
    o_ref[...] = jnp.dot(
        x_ref[...], w_ref[...], preferred_element_type=jnp.float32
    ).astype(o_ref.dtype)


def _matmul_kernel_multi_k(x_ref, w_ref, o_ref, acc_ref):
    # grid = (Mp//tm, Np//tn, Kp//tk); K is the last ("arbitrary") axis so the
    # f32 accumulator is valid across the reduction.
    @pl.when(pl.program_id(2) == 0)
    def _():
        acc_ref[...] = jnp.zeros_like(acc_ref)

    acc_ref[...] += jnp.dot(
        x_ref[...], w_ref[...], preferred_element_type=jnp.float32
    )

    @pl.when(pl.program_id(2) == pl.num_programs(2) - 1)
    def _():
        o_ref[...] = acc_ref[...].astype(o_ref.dtype)


def embedding_matrix_forward(x, word_vec, *, tm=None, tn=None, tk=None,
                             compute_dtype=jnp.bfloat16):
    """y = x @ word_vec (SERM EmbeddingMatrix forward), Pallas tiled matmul.

    x:        (batch, seq, input_size)   float32
    word_vec: (input_size, output_size)  float32
    returns:  (batch, seq, output_size)  float32
    """
    batch, seq, K = x.shape
    Kw, N = word_vec.shape
    assert K == Kw, "input_size mismatch"

    M = batch * seq

    # ---- tile selection -----------------------------------------------------
    # bf16 packs 2 rows per sublane -> keep sublane dims multiples of 16,
    # lane dims multiples of 128.  Large tn/tk amortize the ~0.35us/step
    # overhead; tm is capped so scratch does not scale with batch*seq.
    if tm is None:
        tm = min(_round_up(M, 16), 256)
    if tk is None:
        tk = min(_round_up(K, 128), 512)
    if tn is None:
        tn = min(_round_up(N, 128), 512)

    # ---- VMEM budget (double-buffered inputs/outputs + f32 accumulator) -----
    in_bytes = jnp.dtype(compute_dtype).itemsize
    vmem_needed = (2 * tm * tk * in_bytes      # x tiles
                   + 2 * tk * tn * in_bytes    # weight tiles
                   + 2 * tm * tn * 4           # output tiles (f32)
                   + tm * tn * 4)              # f32 accumulator
    # Conservative working budget (v7x has only 64 MiB physical VMEM per core).
    assert vmem_needed <= 48 * 1024 * 1024, (
        f"tile choice needs {vmem_needed} bytes of VMEM; shrink tm/tn/tk")
    vmem_limit = min(max(vmem_needed + (4 << 20), 32 << 20), 48 << 20)

    # ---- pad to tile multiples (zero padding is exact for a matmul) ---------
    Mp, Kp, Np = _round_up(M, tm), _round_up(K, tk), _round_up(N, tn)

    x2d = x.reshape(M, K).astype(compute_dtype)
    w = word_vec.astype(compute_dtype)
    if (Mp, Kp) != (M, K):
        x2d = jnp.pad(x2d, ((0, Mp - M), (0, Kp - K)))
    if (Kp, Np) != (K, N):
        w = jnp.pad(w, ((0, Kp - K), (0, Np - N)))

    out_dtype = x.dtype
    n_k = Kp // tk

    if n_k == 1:
        # Single reduction step: no accumulator scratch, 2-D parallel grid.
        out2d = pl.pallas_call(
            _matmul_kernel_single_k,
            out_shape=jax.ShapeDtypeStruct((Mp, Np), out_dtype),
            grid_spec=pltpu.PrefetchScalarGridSpec(
                num_scalar_prefetch=0,
                grid=(Mp // tm, Np // tn),
                in_specs=[
                    pl.BlockSpec((tm, Kp), lambda i, j: (i, 0)),
                    pl.BlockSpec((Kp, tn), lambda i, j: (0, j)),
                ],
                out_specs=pl.BlockSpec((tm, tn), lambda i, j: (i, j)),
            ),
            compiler_params=pltpu.CompilerParams(
                dimension_semantics=("parallel", "parallel"),
                vmem_limit_bytes=vmem_limit,
            ),
        )(x2d, w)
    else:
        out2d = pl.pallas_call(
            _matmul_kernel_multi_k,
            out_shape=jax.ShapeDtypeStruct((Mp, Np), out_dtype),
            grid_spec=pltpu.PrefetchScalarGridSpec(
                num_scalar_prefetch=0,
                grid=(Mp // tm, Np // tn, n_k),
                in_specs=[
                    pl.BlockSpec((tm, tk), lambda i, j, k: (i, k)),
                    pl.BlockSpec((tk, tn), lambda i, j, k: (k, j)),
                ],
                out_specs=pl.BlockSpec((tm, tn), lambda i, j, k: (i, j)),
                scratch_shapes=[pltpu.VMEM((tm, tn), jnp.float32)],
            ),
            compiler_params=pltpu.CompilerParams(
                dimension_semantics=("parallel", "parallel", "arbitrary"),
                vmem_limit_bytes=vmem_limit,
            ),
        )(x2d, w)

    return out2d[:M, :N].reshape(batch, seq, N)


# TODO(synk): if the caller's x is a true one-hot (embedding lookup), a
# scalar-prefetch row-gather kernel would beat this dense matmul by ~K/M in
# HBM traffic; the SERM module feeds dense activations, so the matmul is kept.


if __name__ == "__main__":
    key = jax.random.PRNGKey(0)
    k1, k2, k3, k4 = jax.random.split(key, 4)

    # --- case 1: small shapes consistent with the module (single-K path) ----
    batch, seq = 2, 8
    input_size, output_size = 256, 128
    x = jax.random.normal(k1, (batch, seq, input_size), dtype=jnp.float32)
    word_vec = jax.random.normal(k2, (input_size, output_size),
                                 dtype=jnp.float32)

    y = embedding_matrix_forward(x, word_vec)
    jax.block_until_ready(y)
    assert y.shape == (batch, seq, output_size)

    # Fair reference: same bf16-cast inputs, f32 accumulation (matches the
    # kernel's math exactly up to accumulation order).
    xb = x.astype(jnp.bfloat16).astype(jnp.float32)
    wb = word_vec.astype(jnp.bfloat16).astype(jnp.float32)
    y_ref = jnp.einsum("bsk,kn->bsn", xb, wb)
    assert jnp.allclose(y, y_ref, atol=1e-3, rtol=1e-3)

    # --- case 2: ragged shapes + multi-K reduction path ----------------------
    batch2, seq2 = 3, 7
    in2, out2 = 1100, 200           # not tile multiples; K needs 3 tiles
    x2 = jax.random.normal(k3, (batch2, seq2, in2), dtype=jnp.float32)
    w2 = jax.random.normal(k4, (in2, out2), dtype=jnp.float32)

    y2 = embedding_matrix_forward(x2, w2)
    jax.block_until_ready(y2)
    assert y2.shape == (batch2, seq2, out2)

    x2b = x2.astype(jnp.bfloat16).astype(jnp.float32)
    w2b = w2.astype(jnp.bfloat16).astype(jnp.float32)
    y2_ref = jnp.einsum("bsk,kn->bsn", x2b, w2b)
    assert jnp.allclose(y2, y2_ref, atol=1e-2, rtol=1e-3)

    print("KERNEL_OK")
</pallas_src>

<mosaic_0001>
module attributes {stable_mosaic.version = 11 : i64} {
  func.func @_matmul_kernel_single_k(%arg0: i32, %arg1: i32, %arg2: memref<16x256xbf16, #tpu.memory_space<vmem>>, %arg3: memref<256x128xbf16, #tpu.memory_space<vmem>>, %arg4: memref<16x128xf32, #tpu.memory_space<vmem>>) attributes {dimension_semantics = [#tpu.dimension_semantics<parallel>, #tpu.dimension_semantics<parallel>], iteration_bounds = array<i64: 1, 1>, scalar_prefetch = 0 : i64, scratch_operands = 0 : i64, tpu.core_type = #tpu.core_type<tc>, window_params = [{transform_indices = @transform_0, window_bounds = array<i64: 16, 256>}, {transform_indices = @transform_1, window_bounds = array<i64: 256, 128>}, {transform_indices = @transform_2, window_bounds = array<i64: 16, 128>}]} {
    %c0 = arith.constant 0 : index
    %c0_0 = arith.constant 0 : index
    %0 = vector.load %arg2[%c0, %c0_0] : memref<16x256xbf16, #tpu.memory_space<vmem>>, vector<16x256xbf16>
    %c0_1 = arith.constant 0 : index
    %c0_2 = arith.constant 0 : index
    %1 = vector.load %arg3[%c0_1, %c0_2] : memref<256x128xbf16, #tpu.memory_space<vmem>>, vector<256x128xbf16>
    %cst = arith.constant dense<0.000000e+00> : vector<16x128xf32>
    %2 = tpu.matmul %0, %1, %cst {dimension_numbers = #tpu.dot_dimension_numbers<[1], [0], [0], [1], [0, 0, 1, 1], [], []>} : vector<16x256xbf16>, vector<256x128xbf16>, vector<16x128xf32> -> vector<16x128xf32>
    %c0_3 = arith.constant 0 : index
    %c0_4 = arith.constant 0 : index
    %3 = vector.load %arg4[%c0_3, %c0_4] : memref<16x128xf32, #tpu.memory_space<vmem>>, vector<16x128xf32>
    tpu.vector_store %arg4[%c0_3, %c0_4], %2 {strides = array<i32>} : memref<16x128xf32, #tpu.memory_space<vmem>>, vector<16x128xf32>,
    return
  }
  func.func @transform_0(%arg0: i32, %arg1: i32) -> (i32, i32) {
    %c0_i32 = arith.constant 0 : i32
    %c0_i32_0 = arith.constant 0 : i32
    return %arg0, %c0_i32 : i32, i32
  }
  func.func @transform_1(%arg0: i32, %arg1: i32) -> (i32, i32) {
    %c0_i32 = arith.constant 0 : i32
    %c0_i32_0 = arith.constant 0 : i32
    return %c0_i32, %arg1 : i32, i32
  }
  func.func @transform_2(%arg0: i32, %arg1: i32) -> (i32, i32) {
    %c0_i32 = arith.constant 0 : i32
    return %arg0, %arg1 : i32, i32
  }
}

</mosaic_0001>

<llo_original>
// kernel: tpu_custom_call.1
$region0: #{tpu_custom_call.1}
  #allocation0 [shape = 'u32[]', space=smem, size = 0x4, offset = 0x4, fixed_abs, tag = 'smem constant byte address 0x4 - core index']
  #allocation1 [shape = 'u32[144,128]{1,0:T(1,128)}', space=vmem, size = 0x12000, scoped, tag = 'internal scratch']
  %s0 = inlined_call_operand.hbm [shape: bf16[16,256], index: 0, kind: input, shape index: {}]
  %s1 = inlined_call_operand.hbm [shape: bf16[256,128], index: 1, kind: input, shape index: {}]
  %s2 = inlined_call_operand.hbm [shape: f32[16,128], index: 2, kind: output, shape index: {}]
  %s3 = sld [smem:[#allocation0]]
  $region26: #{tpu_custom_call.1} parent=0
    _
  %s5 = ssub.s32 1, %s3
  %s6 = scalar_select 0, %s5, %s3
  $region1: #{tpu_custom_call.1} parent=0
    #allocation2 [shape = 'u8[8192]{0}', space=vmem, size = 0x2000, scoped, tag = 'input window, operand 0, single buffered']
    #allocation3 [shape = 's32[1]{0}', space=sflag, size = 0x4, scoped, tag = 'scoped memory for tpu_custom_call.1']
    #allocation4 [shape = 's32[1]{0}', space=sflag, size = 0x4, scoped, tag = 'scoped memory for tpu_custom_call.1']
    #allocation5 [shape = 'u8[65536]{0}', space=vmem, size = 0x10000, scoped, tag = 'input window, operand 1, single buffered']
    #allocation6 [shape = 's32[1]{0}', space=sflag, size = 0x4, scoped, tag = 'scoped memory for tpu_custom_call.1']
    #allocation7 [shape = 'u8[8192]{0}', space=vmem, size = 0x2000, scoped, tag = 'output window, operand 0, single buffered']
    %7 = vsyncpa [#allocation3], 0
    %8 = vsyncpa [#allocation6], 0
    %9 = vsyncpa [#allocation4], 0
    // Predicated region
    $region2: #{tpu_custom_call.1} parent=1 // pred_check
      _
    $region3: #{tpu_custom_call.1} parent=1 // pred_check_branch
      %11 = sbr.rel (0) target = $region5
    $region4: #{tpu_custom_call.1} parent=1 // pred_region
      %s13 = ssub.s32 256, 256
      %14 = vsyncadd [#allocation3], %s13
      %s15 = sshll.u32 [#allocation2], 4
      %s16 = int_to_ptr.vmem [resolvable:$true] %s15
      %21 = dma.hbm_to_vmem [thread:$0]  %s0, 256, %s16, [#allocation3], 128, 128, 8
    $region5: #{tpu_custom_call.1} parent=1 // pred_fallthru
      _
    // Predicated region
    $region6: #{tpu_custom_call.1} parent=1 // pred_check
      _
    $region7: #{tpu_custom_call.1} parent=1 // pred_check_branch
      %23 = sbr.rel (0) target = $region9
    $region8: #{tpu_custom_call.1} parent=1 // pred_region
      %s25 = ssub.s32 2048, 2048
      %26 = vsyncadd [#allocation6], %s25
      %s27 = sshll.u32 [#allocation5], 4
      %s28 = int_to_ptr.vmem [resolvable:$true] %s27
      %33 = dma.hbm_to_vmem [thread:$0]  %s1, 2048, %s28, [#allocation6], 64, 64, 4
    $region9: #{tpu_custom_call.1} parent=1 // pred_fallthru
      _
    // Predicated region
    $region10: #{tpu_custom_call.1} parent=1 // pred_check
      _
    $region11: #{tpu_custom_call.1} parent=1 // pred_check_branch
      %35 = sbr.rel (0) target = $region13
    $region12: #{tpu_custom_call.1} parent=1 // pred_region
      %36 = dma.done [#allocation3], 256
    $region13: #{tpu_custom_call.1} parent=1 // pred_fallthru
      _
    // Predicated region
    $region14: #{tpu_custom_call.1} parent=1 // pred_check
      _
    $region15: #{tpu_custom_call.1} parent=1 // pred_check_branch
      %38 = sbr.rel (0) target = $region17
    $region16: #{tpu_custom_call.1} parent=1 // pred_region
      %39 = dma.done [#allocation6], 2048
    $region17: #{tpu_custom_call.1} parent=1 // pred_fallthru
      _
    %v41 = vld [vmem:[#allocation2] sm:$0xff]
    %v42 = vld [vmem:[#allocation2 + $0x8] sm:$0xff]
    %v43 = vld [vmem:[#allocation5] sm:$0xf]
    %v44 = vld [vmem:[#allocation5 + $0x4] sm:$0xf]
    %v45 = vld [vmem:[#allocation5 + $0x8] sm:$0xf]
    %v46 = vld [vmem:[#allocation5 + $0xc] sm:$0xf]
    %v47 = vld [vmem:[#allocation5 + $0x10] sm:$0xf]
    %v48 = vld [vmem:[#allocation5 + $0x14] sm:$0xf]
    %v49 = vld [vmem:[#allocation5 + $0x18] sm:$0xf]
    %v50 = vld [vmem:[#allocation5 + $0x1c] sm:$0xf]
    %v51 = vld [vmem:[#allocation5 + $0x20] sm:$0xf]
    %v52 = vld [vmem:[#allocation5 + $0x24] sm:$0xf]
    %v53 = vld [vmem:[#allocation5 + $0x28] sm:$0xf]
    %v54 = vld [vmem:[#allocation5 + $0x2c] sm:$0xf]
    %v55 = vld [vmem:[#allocation5 + $0x30] sm:$0xf]
    %v56 = vld [vmem:[#allocation5 + $0x34] sm:$0xf]
    %v57 = vld [vmem:[#allocation5 + $0x38] sm:$0xf]
    %v58 = vld [vmem:[#allocation5 + $0x3c] sm:$0xf]
    %v59 = vld [vmem:[#allocation5 + $0x40] sm:$0xf]
    %v60 = vld [vmem:[#allocation5 + $0x44] sm:$0xf]
    %v61 = vld [vmem:[#allocation5 + $0x48] sm:$0xf]
    %v62 = vld [vmem:[#allocation5 + $0x4c] sm:$0xf]
    %v63 = vld [vmem:[#allocation5 + $0x50] sm:$0xf]
    %v64 = vld [vmem:[#allocation5 + $0x54] sm:$0xf]
    %v65 = vld [vmem:[#allocation5 + $0x58] sm:$0xf]
    %v66 = vld [vmem:[#allocation5 + $0x5c] sm:$0xf]
    %v67 = vld [vmem:[#allocation5 + $0x60] sm:$0xf]
    %v68 = vld [vmem:[#allocation5 + $0x64] sm:$0xf]
    %v69 = vld [vmem:[#allocation5 + $0x68] sm:$0xf]
    %v70 = vld [vmem:[#allocation5 + $0x6c] sm:$0xf]
    %v71 = vld [vmem:[#allocation5 + $0x70] sm:$0xf]
    %v72 = vld [vmem:[#allocation5 + $0x74] sm:$0xf]
    %v73 = vld [vmem:[#allocation5 + $0x78] sm:$0xf]
    %v74 = vld [vmem:[#allocation5 + $0x7c] sm:$0xf]
    %v77 = vunpack.c.l.b16 %v41
    %v78 = vunpack.c.h.b16 %v41
    %v79 = vunpack.c.l.b16 %v42
    %v80 = vunpack.c.h.b16 %v42
    %v81 = vpack.c.b16 %v79, %v77
    %v82 = vpack.c.b16 %v80, %v78
    %v117 = vunpack.c.l.b16 %v43
    %v118 = vunpack.c.l.b16 %v44
    %v119 = vunpack.c.l.b16 %v45
    %v120 = vunpack.c.l.b16 %v46
    %v121 = vunpack.c.l.b16 %v47
    %v122 = vunpack.c.l.b16 %v48
    %v123 = vunpack.c.l.b16 %v49
    %v124 = vunpack.c.l.b16 %v50
    %v125 = vunpack.c.l.b16 %v51
    %v126 = vunpack.c.l.b16 %v52
    %v127 = vunpack.c.l.b16 %v53
    %v128 = vunpack.c.l.b16 %v54
    %v129 = vunpack.c.l.b16 %v55
    %v130 = vunpack.c.l.b16 %v56
    %v131 = vunpack.c.l.b16 %v57
    %v132 = vunpack.c.l.b16 %v58
    %v133 = vunpack.c.l.b16 %v59
    %v134 = vunpack.c.l.b16 %v60
    %v135 = vunpack.c.l.b16 %v61
    %v136 = vunpack.c.l.b16 %v62
    %v137 = vunpack.c.l.b16 %v63
    %v138 = vunpack.c.l.b16 %v64
    %v139 = vunpack.c.l.b16 %v65
    %v140 = vunpack.c.l.b16 %v66
    %v141 = vunpack.c.l.b16 %v67
    %v142 = vunpack.c.l.b16 %v68
    %v143 = vunpack.c.l.b16 %v69
    %v144 = vunpack.c.l.b16 %v70
    %v145 = vunpack.c.l.b16 %v71
    %v146 = vunpack.c.l.b16 %v72
    %v147 = vunpack.c.l.b16 %v73
    %v148 = vunpack.c.l.b16 %v74
    %v149 = vpack.c.b16 %v118, %v117
    %v150 = vpack.c.b16 %v120, %v119
    %v151 = vpack.c.b16 %v122, %v121
    %v152 = vpack.c.b16 %v124, %v123
    %v153 = vpack.c.b16 %v126, %v125
    %v154 = vpack.c.b16 %v128, %v127
    %v155 = vpack.c.b16 %v130, %v129
    %v156 = vpack.c.b16 %v132, %v131
    %v157 = vpack.c.b16 %v134, %v133
    %v158 = vpack.c.b16 %v136, %v135
    %v159 = vpack.c.b16 %v138, %v137
    %v160 = vpack.c.b16 %v140, %v139
    %v161 = vpack.c.b16 %v142, %v141
    %v162 = vpack.c.b16 %v144, %v143
    %v163 = vpack.c.b16 %v146, %v145
    %v164 = vpack.c.b16 %v148, %v147
    %181 = vmatprep.subr.bf16.mxu0 0
    %182 = vmatpush1.bf16.msra.mxu0 %v149
    %183 = vmatprep.subr.bf16.mxu0 0
    %184 = vmatpush1.bf16.msra.mxu0 %v150
    %185 = vmatprep.subr.bf16.mxu0 0
    %186 = vmatpush1.bf16.msra.mxu0 %v151
    %187 = vmatprep.subr.bf16.mxu0 0
    %188 = vmatpush1.bf16.msra.mxu0 %v152
    %189 = vmatprep.subr.bf16.mxu0 0
    %190 = vmatpush1.bf16.msra.mxu0 %v153
    %191 = vmatprep.subr.bf16.mxu0 0
    %192 = vmatpush1.bf16.msra.mxu0 %v154
    %193 = vmatprep.subr.bf16.mxu0 0
    %194 = vmatpush1.bf16.msra.mxu0 %v155
    %195 = vmatprep.subr.bf16.mxu0 0
    %196 = vmatpush1.bf16.msra.mxu0 %v156
    %197 = vmatprep.subr.bf16.mxu0 0
    %198 = vmatpush1.bf16.msra.mxu0 %v157
    %199 = vmatprep.subr.bf16.mxu0 0
    %200 = vmatpush1.bf16.msra.mxu0 %v158
    %201 = vmatprep.subr.bf16.mxu0 0
    %202 = vmatpush1.bf16.msra.mxu0 %v159
    %203 = vmatprep.subr.bf16.mxu0 0
    %204 = vmatpush1.bf16.msra.mxu0 %v160
    %205 = vmatprep.subr.bf16.mxu0 0
    %206 = vmatpush1.bf16.msra.mxu0 %v161
    %207 = vmatprep.subr.bf16.mxu0 0
    %208 = vmatpush1.bf16.msra.mxu0 %v162
    %209 = vmatprep.subr.bf16.mxu0 0
    %210 = vmatpush1.bf16.msra.mxu0 %v163
    %211 = vmatprep.subr.bf16.mxu0 0
    %212 = vmatpush1.bf16.msra.mxu0 %v164
    %213 = vmatprep.mubr.bf16.mxu0 %v82
    %214 = vmatmul.mubr.bf16.gmra.mrb[0].mxu0 %v81
    %v215 = vpop.f32.mrb[0].mxu0
    %v216 = vadd.f32 0.0, %v215
    %v217 = vpop.f32.mrb[0].mxu0
    %v218 = vpop.f32.mrb[0].mxu0
    %v219 = vadd.f32 0.0, %v218
    %v220 = vpop.f32.mrb[0].mxu0
    %221 = vdwg.mxu0
    %222 = vst [vmem:[#allocation7] sm:$0xff] %v216
    %223 = vst [vmem:[#allocation7 + $0x8] sm:$0xff] %v219
    // Predicated region
    $region18: #{tpu_custom_call.1} parent=1 // pred_check
      _
    $region19: #{tpu_custom_call.1} parent=1 // pred_check_branch
      %225 = sbr.rel (0) target = $region21
    $region20: #{tpu_custom_call.1} parent=1 // pred_region
      %s227 = ssub.s32 256, 256
      %228 = vsyncadd [#allocation4], %s227
      %s229 = sshll.u32 [#allocation7], 4
      %s230 = int_to_ptr.vmem [resolvable:$true] %s229
      %235 = dma.vmem_to_hbm [thread:$0]  %s230, 256, %s2, [#allocation4], 128, 128, 8
    $region21: #{tpu_custom_call.1} parent=1 // pred_fallthru
      _
    // Predicated region
    $region22: #{tpu_custom_call.1} parent=1 // pred_check
      _
    $region23: #{tpu_custom_call.1} parent=1 // pred_check_branch
      %237 = sbr.rel (0) target = $region25
    $region24: #{tpu_custom_call.1} parent=1 // pred_region
      %238 = dma.done [#allocation4], 256
    $region25: #{tpu_custom_call.1} parent=1 // pred_fallthru
      _
    %239 = vsyncpa [#allocation3], 1
    %240 = vsyncpa [#allocation6], 1
    %241 = vsyncpa [#allocation4], 1

</llo_original>
